<compile_context>
chip_gen: v5e
topology: v5e:2x2
jax: 0.10.0
libtpu: 0.0.40
codegen_flags: <defaults>
</compile_context>

<pallas_src>
import functools
import math

import jax
import jax.numpy as jnp
from jax import lax
from jax.experimental import pallas as pl
from jax.experimental.pallas import tpu as pltpu


_VMEM_LIMIT_BYTES = 48 * 1024 * 1024  # scoped ceiling; safe on v5e/v6e/v7x


def _pick_tile_h(H, W, *, bytes_per_row, vmem_budget_bytes=24 * 1024 * 1024,
                 cap=1024):
    """Largest row tile (multiple of 8, dividing H, <= cap) whose double-buffered
    pipeline footprint (~bytes_per_row per tile row) stays under the budget."""
    target = vmem_budget_bytes // max(bytes_per_row, 1)
    target = max(8, min(cap, target))
    target -= target % 8
    if target >= H:
        return H
    t = target
    while t >= 8:
        if H % t == 0:
            return t
        t -= 8
    # TODO(synk): H has no multiple-of-8 divisor <= target; a ragged grid
    # (pl.cdiv + row masking) would avoid this full-height fallback, which can
    # exceed v7x's 64 MiB physical VMEM for very tall images.
    return H


# ----------------------------- kernel 1 ------------------------------------ #
# Separable Scharr/32 cross-correlation with zero padding, depth->normal
# geometry, cosine vs. the rendered normal, and the Scharr gradient norm.
def _depth_normal_kernel(depth_ref, halo_ref, normal_ref, cos_ref, gnorm_ref,
                         *, H, W, tile_h, tan_fovx, tan_fovy):
    T = tile_h
    d = depth_ref[...]                        # (T, W) depth rows of this tile
    halo = halo_ref[...]                      # (1, 2, W): [row above, row below]
    top = halo[0, 0:1, :]                     # (1, W); zeros at the true image top
    bot = halo[0, 1:2, :]                     # (1, W); zeros at the true image bottom

    # One sublane iota + one lane iota, reused for border masks and pixel grid.
    row = lax.broadcasted_iota(jnp.int32, (T, W), 0)
    col = lax.broadcasted_iota(jnp.int32, (T, W), 1)

    # Vertically shifted views via sublane rolls + halo selects (no scratch,
    # no full-tile VMEM round trip).  Non-negative shifts only.
    x_up = jnp.where(row == 0, top, pltpu.roll(d, 1, axis=0))          # d[r-1]
    x_dn = jnp.where(row == T - 1, bot, pltpu.roll(d, T - 1, axis=0))  # d[r+1]

    # Separable Scharr/32 (cross-correlation, zero padding):
    #   kernel_x = smooth_y([3,10,3]) (x) diff_x([-1,0,1]) / 32
    #   kernel_y = diff_y([-1,0,1])  (x) smooth_x([3,10,3]) / 32
    A = 3.0 * (x_up + x_dn) + 10.0 * d        # vertical smooth
    B = x_dn - x_up                           # vertical diff

    first_col = col == 0
    last_col = col == (W - 1)

    def at_left(v):    # v[:, j-1], zero at the image's left border
        return jnp.where(first_col, 0.0, pltpu.roll(v, 1, axis=1))

    def at_right(v):   # v[:, j+1], zero at the image's right border
        return jnp.where(last_col, 0.0, pltpu.roll(v, W - 1, axis=1))

    inv32 = 1.0 / 32.0
    gx = (at_right(A) - at_left(A)) * inv32
    gy = (3.0 * (at_left(B) + at_right(B)) + 10.0 * B) * inv32

    # depth -> normal geometry.  Exact reciprocal (kernel is HBM-bound; the
    # non-approx EUP path is hidden and keeps cos numerics tight).
    inv_d = pl.reciprocal(d, approx=False)
    Dx = gx * inv_d
    Dy = gy * inv_d

    row0 = (pl.program_id(0) * T).astype(jnp.float32)   # global row offset of tile
    xg = col.astype(jnp.float32)                         # x[i, j] = j
    yg = row.astype(jnp.float32) + row0                  # y[i, j] = global row
    xoff = xg - (0.5 * W - 0.5)
    yoff = yg - (0.5 * H - 0.5)

    nx = (W / (2.0 * tan_fovx)) * Dx
    ny = (H / (2.0 * tan_fovy)) * Dy
    nz = -(1.0 + xoff * Dx + yoff * Dy)

    inv_dn = lax.rsqrt(nx * nx + ny * ny + nz * nz)      # no eps (matches torch)

    n0 = normal_ref[0]
    n1 = normal_ref[1]
    n2 = normal_ref[2]
    # F.normalize(normal, dim=0, eps=1e-8): x / max(||x||, 1e-8)
    inv_nn = lax.rsqrt(jnp.maximum(n0 * n0 + n1 * n1 + n2 * n2, 1e-16))

    cos_ref[...] = (n0 * nx + n1 * ny + n2 * nz) * (inv_dn * inv_nn)
    gnorm_ref[...] = jnp.sqrt(gx * gx + gy * gy)


# ----------------------------- kernel 2 ------------------------------------ #
# Threshold mask + masked sum.  Per-step partials go into an (8,128) VMEM
# accumulator with pure vreg adds; the resident accumulator is dumped as an
# (8,128) output block on the last step of the reduction ("arbitrary") axis.
# The leading grid axis is "parallel" so v7x can split it across TensorCores.
def _masked_mean_kernel(thr_ref, cos_ref, gnorm_ref, out_ref, acc_ref, *,
                        vreg_acc):
    j = pl.program_id(1)

    @pl.when(j == 0)
    def _init():
        acc_ref[...] = jnp.zeros_like(acc_ref)

    thr = thr_ref[0, 0]
    contrib = jnp.where(gnorm_ref[...] < thr, 1.0 - cos_ref[...], 0.0)

    if vreg_acc:
        t2, w = contrib.shape
        # (8,128)-aligned static slices: pure vreg adds, no cross-lane work.
        part = jnp.zeros((8, 128), jnp.float32)
        for a in range(t2 // 8):
            row_blk = contrib[a * 8:(a + 1) * 8, :]
            for b in range(w // 128):
                part = part + row_blk[:, b * 128:(b + 1) * 128]
        acc_ref[...] += part
    else:
        acc_ref[...] += jnp.sum(contrib, keepdims=True)

    @pl.when(j == pl.num_programs(1) - 1)
    def _finish():
        out_ref[...] = acc_ref[...].reshape(out_ref.shape)


# ----------------------------- quantile ------------------------------------ #
def _quantile_via_topk(x_flat, q):
    """Exact torch.quantile(..., interpolation='linear') without a full sort.
    Uses lax.top_k with k = N - floor(q*(N-1)).
    TODO(synk): a fused in-kernel histogram selection would be O(N) with zero
    extra HBM passes but approximate; kept exact here."""
    n = x_flat.shape[0]
    pos = q * (n - 1)
    i0 = int(math.floor(pos))
    frac = pos - i0
    if i0 >= n - 1:
        return jnp.max(x_flat)
    k = n - i0                      # >= 2
    top = lax.top_k(x_flat, k)[0]   # descending
    v0 = top[k - 1]                 # sorted_ascending[i0]
    v1 = top[k - 2]                 # sorted_ascending[i0 + 1]
    return v0 + jnp.float32(frac) * (v1 - v0)


# ----------------------------- wrapper -------------------------------------- #
def depth_normal_loss(depth, normal, tan_fovx, tan_fovy,
                      depth_grad_filter_quantile=0.9,
                      tile_h=None, tile_h2=None):
    """DepthNormalLoss.forward with scale_factor=None.

    depth: (H, W) float32, normal: (3, H, W) float32. Returns scalar loss.
    """
    H, W = depth.shape
    depth = depth.astype(jnp.float32)
    normal = normal.astype(jnp.float32)

    # ---- kernel 1 tiling (double-buffered footprint ~ 6 planes * 2 bufs * 4B) --
    if tile_h is None:
        tile_h = _pick_tile_h(H, W, bytes_per_row=48 * W, cap=1024)
    if H % tile_h != 0 or (tile_h % 8 != 0 and tile_h != H):
        tile_h = H
    T = tile_h
    nt = H // T

    # 2-row halo per tile (row above / row below; zeros at the image border) so
    # depth itself is streamed from HBM exactly once, never materialized padded.
    zero_row = jnp.zeros((1, W), jnp.float32)
    top_rows = jnp.concatenate([zero_row, depth[T - 1:H - 1:T, :]], axis=0)  # (nt, W)
    bot_rows = jnp.concatenate([depth[T:H:T, :], zero_row], axis=0)          # (nt, W)
    halo = jnp.stack([top_rows, bot_rows], axis=1)                           # (nt, 2, W)

    kern_a = functools.partial(
        _depth_normal_kernel, H=H, W=W, tile_h=T,
        tan_fovx=float(tan_fovx), tan_fovy=float(tan_fovy))

    cos, gnorm = pl.pallas_call(
        kern_a,
        out_shape=(jax.ShapeDtypeStruct((H, W), jnp.float32),
                   jax.ShapeDtypeStruct((H, W), jnp.float32)),
        grid=(nt,),
        in_specs=[pl.BlockSpec((T, W), lambda i: (i, 0)),
                  pl.BlockSpec((1, 2, W), lambda i: (i, 0, 0)),
                  pl.BlockSpec((3, T, W), lambda i: (0, i, 0))],
        out_specs=(pl.BlockSpec((T, W), lambda i: (i, 0)),
                   pl.BlockSpec((T, W), lambda i: (i, 0))),
        compiler_params=pltpu.CompilerParams(
            dimension_semantics=("parallel",),
            vmem_limit_bytes=_VMEM_LIMIT_BYTES),
    )(depth, halo, normal)

    # ---- 0.9-quantile threshold: exact, sort-free (top_k selection) ----------
    thr = _quantile_via_topk(gnorm.reshape(-1), float(depth_grad_filter_quantile))
    thr = thr.reshape(1, 1).astype(jnp.float32)

    # ---- kernel 2 tiling (only 2 planes * 2 bufs -> bigger row tile) ----------
    if tile_h2 is None:
        tile_h2 = _pick_tile_h(H, W, bytes_per_row=16 * W, cap=2048)
    if H % tile_h2 != 0 or (tile_h2 % 8 != 0 and tile_h2 != H):
        tile_h2 = H
    T2 = tile_h2
    nt2 = H // T2

    vreg_acc = (T2 % 8 == 0) and (W % 128 == 0)
    P = 2 if (vreg_acc and nt2 % 2 == 0 and nt2 >= 2) else 1  # v7x: 2 TCs
    steps = nt2 // P

    if vreg_acc:
        out_shape2 = jax.ShapeDtypeStruct((P, 8, 128), jnp.float32)
        out_spec2 = pl.BlockSpec((1, 8, 128), lambda p, j: (p, 0, 0))
        acc_spec = pltpu.VMEM((8, 128), jnp.float32)
    else:
        out_shape2 = jax.ShapeDtypeStruct((1, 1, 1), jnp.float32)
        out_spec2 = pl.BlockSpec((1, 1, 1), lambda p, j: (p, 0, 0))
        acc_spec = pltpu.VMEM((1, 1), jnp.float32)

    kern_b = functools.partial(_masked_mean_kernel, vreg_acc=vreg_acc)
    partials = pl.pallas_call(
        kern_b,
        out_shape=out_shape2,
        grid=(P, steps),
        in_specs=[pl.BlockSpec(memory_space=pltpu.MemorySpace.SMEM),
                  pl.BlockSpec((T2, W), lambda p, j: (p * steps + j, 0)),
                  pl.BlockSpec((T2, W), lambda p, j: (p * steps + j, 0))],
        out_specs=out_spec2,
        scratch_shapes=[acc_spec],
        compiler_params=pltpu.CompilerParams(
            dimension_semantics=("parallel", "arbitrary"),
            vmem_limit_bytes=_VMEM_LIMIT_BYTES),
    )(thr, cos, gnorm)

    return jnp.sum(partials) * jnp.float32(1.0 / float(H * W))


# ----------------------------- reference ------------------------------------ #
def _reference_loss(depth, normal, tan_fovx, tan_fovy, q=0.9):
    """Pure-JAX mirror of the PyTorch module (for a tolerance check)."""
    H, W = depth.shape
    kx = jnp.array([[-3., 0., 3.], [-10., 0., 10.], [-3., 0., 3.]], jnp.float32) / 32.
    ky = jnp.array([[-3., -10., -3.], [0., 0., 0.], [3., 10., 3.]], jnp.float32) / 32.
    dpad = jnp.pad(depth, ((1, 1), (1, 1)))
    gx = jnp.zeros((H, W), jnp.float32)
    gy = jnp.zeros((H, W), jnp.float32)
    for dy in range(3):
        for dx in range(3):
            win = dpad[dy:dy + H, dx:dx + W]
            gx = gx + kx[dy, dx] * win
            gy = gy + ky[dy, dx] * win
    Dx = gx / depth
    Dy = gy / depth
    xg, yg = jnp.meshgrid(jnp.arange(W, dtype=jnp.float32),
                          jnp.arange(H, dtype=jnp.float32), indexing="xy")
    nx = W * Dx / (2.0 * tan_fovx)
    ny = H * Dy / (2.0 * tan_fovy)
    nz = -(1.0 + (xg - W / 2.0 + 0.5) * Dx + (yg - H / 2.0 + 0.5) * Dy)
    dnorm = jnp.stack([nx, ny, nz], axis=0)
    dnorm = dnorm / jnp.linalg.norm(dnorm, axis=0, keepdims=True)
    gnorm = jnp.sqrt(gx * gx + gy * gy)
    thr = jnp.quantile(gnorm, q)
    mask = (gnorm < thr).astype(jnp.float32)
    nrm = normal / jnp.maximum(jnp.linalg.norm(normal, axis=0, keepdims=True), 1e-8)
    return jnp.mean((1.0 - jnp.sum(nrm * dnorm, axis=0)) * mask)


if __name__ == "__main__":
    key = jax.random.PRNGKey(0)
    k1, k2 = jax.random.split(key)

    H, W = 64, 256   # small, lane-dense width; small tiles exercise halos + reduction
    # Positive depth (avoid divide-by-zero in grad / depth, as in real use).
    depth = jax.random.uniform(k1, (H, W), jnp.float32, minval=0.5, maxval=2.0)
    normal = jax.random.normal(k2, (3, H, W), jnp.float32)
    tan_fovx, tan_fovy = 0.7, 0.6

    # tile_h=16 -> 4 tiles in kernel 1 (halo path); tile_h2=16 -> 2x2 grid in
    # kernel 2 (parallel split + multi-step resident accumulator).
    loss = depth_normal_loss(depth, normal, tan_fovx, tan_fovy,
                             tile_h=16, tile_h2=16)
    loss = jax.block_until_ready(loss)

    ref = jax.block_until_ready(_reference_loss(depth, normal, tan_fovx, tan_fovy))

    assert jnp.isfinite(loss), "loss is not finite"
    # rsqrt / interpolation order differences change low-order bits only
    assert abs(float(loss) - float(ref)) <= 5e-3 + 5e-3 * abs(float(ref)), (loss, ref)
    print("KERNEL_OK")
</pallas_src>

<mosaic_0001>
module attributes {stable_mosaic.version = 11 : i64} {
  func.func @_depth_normal_kernel(%arg0: i32, %arg1: memref<16x256xf32, #tpu.memory_space<vmem>>, %arg2: memref<1x2x256xf32, #tpu.memory_space<vmem>>, %arg3: memref<3x16x256xf32, #tpu.memory_space<vmem>>, %arg4: memref<16x256xf32, #tpu.memory_space<vmem>>, %arg5: memref<16x256xf32, #tpu.memory_space<vmem>>) attributes {dimension_semantics = [#tpu.dimension_semantics<parallel>], iteration_bounds = array<i64: 4>, scalar_prefetch = 0 : i64, scratch_operands = 0 : i64, tpu.core_type = #tpu.core_type<tc>, window_params = [{transform_indices = @transform_0, window_bounds = array<i64: 16, 256>}, {transform_indices = @transform_1, window_bounds = array<i64: 1, 2, 256>}, {transform_indices = @transform_2, window_bounds = array<i64: 3, 16, 256>}, {transform_indices = @transform_3, window_bounds = array<i64: 16, 256>}, {transform_indices = @transform_4, window_bounds = array<i64: 16, 256>}]} {
    %c0 = arith.constant 0 : index
    %c0_0 = arith.constant 0 : index
    %0 = vector.load %arg1[%c0, %c0_0] : memref<16x256xf32, #tpu.memory_space<vmem>>, vector<16x256xf32>
    %c0_1 = arith.constant 0 : index
    %c0_2 = arith.constant 0 : index
    %c0_3 = arith.constant 0 : index
    %1 = vector.load %arg2[%c0_1, %c0_2, %c0_3] : memref<1x2x256xf32, #tpu.memory_space<vmem>>, vector<1x2x256xf32>
    %2 = vector.extract_strided_slice %1 {offsets = [0, 0, 0], sizes = [1, 1, 256], strides = [1, 1, 1]} : vector<1x2x256xf32> to vector<1x1x256xf32>
    %3 = vector.shape_cast %2 : vector<1x1x256xf32> to vector<1x256xf32>
    %4 = vector.extract_strided_slice %1 {offsets = [0, 1, 0], sizes = [1, 1, 256], strides = [1, 1, 1]} : vector<1x2x256xf32> to vector<1x1x256xf32>
    %5 = vector.shape_cast %4 : vector<1x1x256xf32> to vector<1x256xf32>
    %6 = tpu.iota {dimensions = array<i32: 0>} : vector<16x256xi32>
    %7 = tpu.iota {dimensions = array<i32: 1>} : vector<16x256xi32>
    %c0_i32 = arith.constant 0 : i32
    %8 = vector.broadcast %c0_i32 : i32 to vector<16x256xi32>
    %9 = arith.cmpi eq, %6, %8 : vector<16x256xi32>
    %c1_i32 = arith.constant 1 : i32
    %10 = tpu.dynamic_rotate %0 by %c1_i32 dim 0 : vector<16x256xf32>, i32 -> vector<16x256xf32>
    %11 = vector.shape_cast %3 : vector<1x256xf32> to vector<1x256xf32>
    %12 = vector.broadcast %11 : vector<1x256xf32> to vector<16x256xf32>
    %13 = arith.select %9, %12, %10 : vector<16x256xi1>, vector<16x256xf32>
    %c15_i32 = arith.constant 15 : i32
    %14 = vector.broadcast %c15_i32 : i32 to vector<16x256xi32>
    %15 = arith.cmpi eq, %6, %14 : vector<16x256xi32>
    %c15_i32_4 = arith.constant 15 : i32
    %16 = tpu.dynamic_rotate %0 by %c15_i32_4 dim 0 : vector<16x256xf32>, i32 -> vector<16x256xf32>
    %17 = vector.shape_cast %5 : vector<1x256xf32> to vector<1x256xf32>
    %18 = vector.broadcast %17 : vector<1x256xf32> to vector<16x256xf32>
    %19 = arith.select %15, %18, %16 : vector<16x256xi1>, vector<16x256xf32>
    %20 = arith.addf %13, %19 : vector<16x256xf32>
    %cst = arith.constant 3.000000e+00 : f32
    %21 = vector.broadcast %cst : f32 to vector<16x256xf32>
    %22 = arith.mulf %21, %20 : vector<16x256xf32>
    %cst_5 = arith.constant 1.000000e+01 : f32
    %23 = vector.broadcast %cst_5 : f32 to vector<16x256xf32>
    %24 = arith.mulf %23, %0 : vector<16x256xf32>
    %25 = arith.addf %22, %24 : vector<16x256xf32>
    %26 = arith.subf %19, %13 : vector<16x256xf32>
    %c0_i32_6 = arith.constant 0 : i32
    %27 = vector.broadcast %c0_i32_6 : i32 to vector<16x256xi32>
    %28 = arith.cmpi eq, %7, %27 : vector<16x256xi32>
    %c255_i32 = arith.constant 255 : i32
    %29 = vector.broadcast %c255_i32 : i32 to vector<16x256xi32>
    %30 = arith.cmpi eq, %7, %29 : vector<16x256xi32>
    %c255_i32_7 = arith.constant 255 : i32
    %31 = tpu.dynamic_rotate %25 by %c255_i32_7 dim 1 : vector<16x256xf32>, i32 -> vector<16x256xf32>
    %cst_8 = arith.constant 0.000000e+00 : f32
    %32 = vector.broadcast %cst_8 : f32 to vector<16x256xf32>
    %33 = arith.select %30, %32, %31 : vector<16x256xi1>, vector<16x256xf32>
    %c1_i32_9 = arith.constant 1 : i32
    %34 = tpu.dynamic_rotate %25 by %c1_i32_9 dim 1 : vector<16x256xf32>, i32 -> vector<16x256xf32>
    %cst_10 = arith.constant 0.000000e+00 : f32
    %35 = vector.broadcast %cst_10 : f32 to vector<16x256xf32>
    %36 = arith.select %28, %35, %34 : vector<16x256xi1>, vector<16x256xf32>
    %37 = arith.subf %33, %36 : vector<16x256xf32>
    %cst_11 = arith.constant 3.125000e-02 : f32
    %38 = vector.broadcast %cst_11 : f32 to vector<16x256xf32>
    %39 = arith.mulf %37, %38 : vector<16x256xf32>
    %c1_i32_12 = arith.constant 1 : i32
    %40 = tpu.dynamic_rotate %26 by %c1_i32_12 dim 1 : vector<16x256xf32>, i32 -> vector<16x256xf32>
    %cst_13 = arith.constant 0.000000e+00 : f32
    %41 = vector.broadcast %cst_13 : f32 to vector<16x256xf32>
    %42 = arith.select %28, %41, %40 : vector<16x256xi1>, vector<16x256xf32>
    %c255_i32_14 = arith.constant 255 : i32
    %43 = tpu.dynamic_rotate %26 by %c255_i32_14 dim 1 : vector<16x256xf32>, i32 -> vector<16x256xf32>
    %cst_15 = arith.constant 0.000000e+00 : f32
    %44 = vector.broadcast %cst_15 : f32 to vector<16x256xf32>
    %45 = arith.select %30, %44, %43 : vector<16x256xi1>, vector<16x256xf32>
    %46 = arith.addf %42, %45 : vector<16x256xf32>
    %cst_16 = arith.constant 3.000000e+00 : f32
    %47 = vector.broadcast %cst_16 : f32 to vector<16x256xf32>
    %48 = arith.mulf %47, %46 : vector<16x256xf32>
    %cst_17 = arith.constant 1.000000e+01 : f32
    %49 = vector.broadcast %cst_17 : f32 to vector<16x256xf32>
    %50 = arith.mulf %49, %26 : vector<16x256xf32>
    %51 = arith.addf %48, %50 : vector<16x256xf32>
    %cst_18 = arith.constant 3.125000e-02 : f32
    %52 = vector.broadcast %cst_18 : f32 to vector<16x256xf32>
    %53 = arith.mulf %51, %52 : vector<16x256xf32>
    %54 = tpu.reciprocal %0 : vector<16x256xf32> -> vector<16x256xf32>
    %55 = arith.mulf %39, %54 : vector<16x256xf32>
    %56 = arith.mulf %53, %54 : vector<16x256xf32>
    %c16_i32 = arith.constant 16 : i32
    %57 = arith.muli %arg0, %c16_i32 : i32
    %58 = arith.sitofp %57 : i32 to f32
    %59 = arith.sitofp %7 : vector<16x256xi32> to vector<16x256xf32>
    %60 = arith.sitofp %6 : vector<16x256xi32> to vector<16x256xf32>
    %61 = vector.broadcast %58 : f32 to vector<16x256xf32>
    %62 = arith.addf %60, %61 : vector<16x256xf32>
    %cst_19 = arith.constant 1.275000e+02 : f32
    %63 = vector.broadcast %cst_19 : f32 to vector<16x256xf32>
    %64 = arith.subf %59, %63 : vector<16x256xf32>
    %cst_20 = arith.constant 3.150000e+01 : f32
    %65 = vector.broadcast %cst_20 : f32 to vector<16x256xf32>
    %66 = arith.subf %62, %65 : vector<16x256xf32>
    %cst_21 = arith.constant 182.857147 : f32
    %67 = vector.broadcast %cst_21 : f32 to vector<16x256xf32>
    %68 = arith.mulf %67, %55 : vector<16x256xf32>
    %cst_22 = arith.constant 53.3333321 : f32
    %69 = vector.broadcast %cst_22 : f32 to vector<16x256xf32>
    %70 = arith.mulf %69, %56 : vector<16x256xf32>
    %71 = arith.mulf %64, %55 : vector<16x256xf32>
    %cst_23 = arith.constant 1.000000e+00 : f32
    %72 = vector.broadcast %cst_23 : f32 to vector<16x256xf32>
    %73 = arith.addf %72, %71 : vector<16x256xf32>
    %74 = arith.mulf %66, %56 : vector<16x256xf32>
    %75 = arith.addf %73, %74 : vector<16x256xf32>
    %cst_24 = arith.constant 0.000000e+00 : f32
    %76 = vector.broadcast %cst_24 : f32 to vector<16x256xf32>
    %77 = arith.subf %76, %75 : vector<16x256xf32>
    %78 = arith.mulf %68, %68 : vector<16x256xf32>
    %79 = arith.mulf %70, %70 : vector<16x256xf32>
    %80 = arith.addf %78, %79 : vector<16x256xf32>
    %81 = arith.mulf %77, %77 : vector<16x256xf32>
    %82 = arith.addf %80, %81 : vector<16x256xf32>
    %83 = math.rsqrt %82 : vector<16x256xf32>
    %c0_25 = arith.constant 0 : index
    %c0_26 = arith.constant 0 : index
    %c0_27 = arith.constant 0 : index
    %84 = vector.load %arg3[%c0_25, %c0_26, %c0_27] : memref<3x16x256xf32, #tpu.memory_space<vmem>>, vector<1x16x256xf32>
    %85 = vector.shape_cast %84 : vector<1x16x256xf32> to vector<16x256xf32>
    %c1 = arith.constant 1 : index
    %c0_28 = arith.constant 0 : index
    %c0_29 = arith.constant 0 : index
    %86 = vector.load %arg3[%c1, %c0_28, %c0_29] : memref<3x16x256xf32, #tpu.memory_space<vmem>>, vector<1x16x256xf32>
    %87 = vector.shape_cast %86 : vector<1x16x256xf32> to vector<16x256xf32>
    %c2 = arith.constant 2 : index
    %c0_30 = arith.constant 0 : index
    %c0_31 = arith.constant 0 : index
    %88 = vector.load %arg3[%c2, %c0_30, %c0_31] : memref<3x16x256xf32, #tpu.memory_space<vmem>>, vector<1x16x256xf32>
    %89 = vector.shape_cast %88 : vector<1x16x256xf32> to vector<16x256xf32>
    %90 = arith.mulf %85, %85 : vector<16x256xf32>
    %91 = arith.mulf %87, %87 : vector<16x256xf32>
    %92 = arith.addf %90, %91 : vector<16x256xf32>
    %93 = arith.mulf %89, %89 : vector<16x256xf32>
    %94 = arith.addf %92, %93 : vector<16x256xf32>
    %cst_32 = arith.constant 1.000000e-16 : f32
    %95 = vector.broadcast %cst_32 : f32 to vector<16x256xf32>
    %96 = arith.maximumf %94, %95 : vector<16x256xf32>
    %97 = math.rsqrt %96 : vector<16x256xf32>
    %98 = arith.mulf %85, %68 : vector<16x256xf32>
    %99 = arith.mulf %87, %70 : vector<16x256xf32>
    %100 = arith.addf %98, %99 : vector<16x256xf32>
    %101 = arith.mulf %89, %77 : vector<16x256xf32>
    %102 = arith.addf %100, %101 : vector<16x256xf32>
    %103 = arith.mulf %83, %97 : vector<16x256xf32>
    %104 = arith.mulf %102, %103 : vector<16x256xf32>
    %c0_33 = arith.constant 0 : index
    %c0_34 = arith.constant 0 : index
    %105 = vector.load %arg4[%c0_33, %c0_34] : memref<16x256xf32, #tpu.memory_space<vmem>>, vector<16x256xf32>
    tpu.vector_store %arg4[%c0_33, %c0_34], %104 {strides = array<i32>} : memref<16x256xf32, #tpu.memory_space<vmem>>, vector<16x256xf32>,
    %106 = arith.mulf %39, %39 : vector<16x256xf32>
    %107 = arith.mulf %53, %53 : vector<16x256xf32>
    %108 = arith.addf %106, %107 : vector<16x256xf32>
    %109 = math.sqrt %108 : vector<16x256xf32>
    %c0_35 = arith.constant 0 : index
    %c0_36 = arith.constant 0 : index
    %110 = vector.load %arg5[%c0_35, %c0_36] : memref<16x256xf32, #tpu.memory_space<vmem>>, vector<16x256xf32>
    tpu.vector_store %arg5[%c0_35, %c0_36], %109 {strides = array<i32>} : memref<16x256xf32, #tpu.memory_space<vmem>>, vector<16x256xf32>,
    return
  }
  func.func @transform_0(%arg0: i32) -> (i32, i32) {
    %c0_i32 = arith.constant 0 : i32
    %c0_i32_0 = arith.constant 0 : i32
    return %arg0, %c0_i32 : i32, i32
  }
  func.func @transform_1(%arg0: i32) -> (i32, i32, i32) {
    %c0_i32 = arith.constant 0 : i32
    %c0_i32_0 = arith.constant 0 : i32
    %c0_i32_1 = arith.constant 0 : i32
    return %arg0, %c0_i32, %c0_i32_0 : i32, i32, i32
  }
  func.func @transform_2(%arg0: i32) -> (i32, i32, i32) {
    %c0_i32 = arith.constant 0 : i32
    %c0_i32_0 = arith.constant 0 : i32
    %c0_i32_1 = arith.constant 0 : i32
    return %c0_i32, %arg0, %c0_i32_0 : i32, i32, i32
  }
  func.func @transform_3(%arg0: i32) -> (i32, i32) {
    %c0_i32 = arith.constant 0 : i32
    %c0_i32_0 = arith.constant 0 : i32
    return %arg0, %c0_i32 : i32, i32
  }
  func.func @transform_4(%arg0: i32) -> (i32, i32) {
    %c0_i32 = arith.constant 0 : i32
    %c0_i32_0 = arith.constant 0 : i32
    return %arg0, %c0_i32 : i32, i32
  }
}

</mosaic_0001>

<llo_original>
// kernel: tpu_custom_call.1
$region0: #{tpu_custom_call.1}
  #allocation0 [shape = 'u32[]', space=smem, size = 0x4, offset = 0x4, fixed_abs, tag = 'smem constant byte address 0x4 - core index']
  #allocation1 [shape = 'u32[72,128]{1,0:T(1,128)}', space=vmem, size = 0x9000, scoped, tag = 'internal scratch']
  #allocation11 [shape = 's32[]', space=sflag, size = 0x4, offset = 0, fixed_abs, tag = 'sflag constant byte address 0x0 - dummy sync flag']
  %s0 = inlined_call_operand.hbm [shape: f32[64,256], index: 0, kind: input, shape index: {}]
  %s1 = inlined_call_operand.hbm [shape: f32[4,2,256], index: 1, kind: input, shape index: {}]
  %s2 = inlined_call_operand.hbm [shape: f32[3,64,256], index: 2, kind: input, shape index: {}]
  %s3 = inlined_call_operand.hbm [shape: f32[64,256], index: 3, kind: output, shape index: {0}]
  %s4 = inlined_call_operand.hbm [shape: f32[64,256], index: 4, kind: output, shape index: {1}]
  %5 = xla_tuple %s3, %s4
  %s6 = sld [smem:[#allocation0]]
  $region65: #{tpu_custom_call.1} parent=0
    _
  %s8 = ssub.s32 1, %s6
  %s9 = scalar_select 0, %s8, %s6
  $region1: #{tpu_custom_call.1} parent=0
    #allocation2 [shape = 'u8[32768]{0}', space=vmem, size = 0x8000, scoped, tag = 'input window, operand 0']
    #allocation3 [shape = 's32[2]{0}', space=sflag, size = 0x8, scoped, tag = 'scoped memory for tpu_custom_call.1']
    #allocation4 [shape = 's32[2]{0}', space=sflag, size = 0x8, scoped, tag = 'scoped memory for tpu_custom_call.1']
    #allocation5 [shape = 'u8[4096]{0}', space=vmem, size = 0x1000, scoped, tag = 'input window, operand 1']
    #allocation6 [shape = 's32[2]{0}', space=sflag, size = 0x8, scoped, tag = 'scoped memory for tpu_custom_call.1']
    #allocation7 [shape = 'u8[98304]{0}', space=vmem, size = 0x18000, scoped, tag = 'input window, operand 2']
    #allocation8 [shape = 'u8[32768]{0}', space=vmem, size = 0x8000, scoped, tag = 'output window, operand 0']
    #allocation9 [shape = 'u8[32768]{0}', space=vmem, size = 0x8000, scoped, tag = 'output window, operand 1']
    #allocation10 [shape = 's32[2]{0}', space=sflag, size = 0x8, scoped, tag = 'scoped memory for tpu_custom_call.1']
    %10 = vsyncpa [#allocation3], 0
    %s11 = scalar_lea.sflag [#allocation3], 1
    %12 = vsyncpa %s11, 0
    %13 = vsyncpa [#allocation6], 0
    %s14 = scalar_lea.sflag [#allocation6], 1
    %15 = vsyncpa %s14, 0
    %16 = vsyncpa [#allocation4], 0
    %s17 = scalar_lea.sflag [#allocation4], 1
    %18 = vsyncpa %s17, 0
    %19 = vsyncpa [#allocation10], 0
    %s20 = scalar_lea.sflag [#allocation10], 1
    %21 = vsyncpa %s20, 0
    loop: start=0, step=1, limit=6
    $region2: #{tpu_custom_call.1} parent=1 // loop_pre_header
      _
    $region3: #{tpu_custom_call.1} parent=1 // loop_header
      %s23 = sphi 0, %s27
      %p24 = scmp.ge.s32.totalorder %s23, 6
      %s33 = sphi 0, %s35
      %s36 = sphi 0, %s33
      %s37 = sphi 0, %s36
      %s53 = sphi 0, %s37
      %s59 = sphi 0, %s61
      %s62 = sphi 0, %s59
      %s63 = sphi 0, %s62
      %s79 = sphi 0, %s63
      %s85 = sphi 0, %s87
      %s88 = sphi 0, %s85
      %s89 = sphi 0, %s88
      %s105 = sphi 0, %s89
      %s111 = sphi 0, %s113
      %s114 = sphi 0, %s111
      %s115 = sphi 0, %s114
      %s131 = sphi 0, %s115
      %s137 = sphi 0, %s139
      %s140 = sphi 0, %s137
      %s141 = sphi 0, %s140
      %s157 = sphi 0, %s141
    $region4: #{tpu_custom_call.1} parent=1 // loop_header_branch
      %26 = sbr.rel (%p24) target = $region8
    $region5: #{tpu_custom_call.1} parent=1 // loop_body
      %s28 = ssub.s32 %s23, 1
      %s29 = ssub.s32 %s23, 2
      %s30 = sadd.s32 %s23, 1
      %s31 = ssub.s32 %s23, %s30
      %p32 = scmp.eq.s32.totalorder %s31, 0
      %s34 = sadd.s32 %s33, 1
      %s35 = scalar_select %p32, %s33, %s34
      %p38 = pneg %p32
      %p39 = scmp.eq.s32.totalorder %s23, 3
      %p40 = por %p38, %p39
      %p41 = scmp.ne.s32.totalorder %s33, %s36
      %p42 = scmp.eq.s32.totalorder %s23, 0
      %p43 = por %p41, %p42
      %p44 = scmp.ne.s32.totalorder %s33, %s36
      %p45 = scmp.eq.s32.totalorder %s28, 3
      %p46 = por %p44, %p45
      %p47 = scmp.ne.s32.totalorder %s36, %s37
      %p48 = scmp.eq.s32.totalorder %s28, 0
      %p49 = por %p47, %p48
      %p50 = scmp.ne.s32.totalorder %s36, %s37
      %p51 = scmp.eq.s32.totalorder %s29, 3
      %p52 = por %p50, %p51
      %p54 = scmp.ne.s32.totalorder %s37, %s53
      %p55 = scmp.eq.s32.totalorder %s29, 0
      %p56 = por %p54, %p55
      %s57 = ssub.s32 %s23, %s30
      %p58 = scmp.eq.s32.totalorder %s57, 0
      %s60 = sadd.s32 %s59, 1
      %s61 = scalar_select %p58, %s59, %s60
      %p64 = pneg %p58
      %p65 = scmp.eq.s32.totalorder %s23, 3
      %p66 = por %p64, %p65
      %p67 = scmp.ne.s32.totalorder %s59, %s62
      %p68 = scmp.eq.s32.totalorder %s23, 0
      %p69 = por %p67, %p68
      %p70 = scmp.ne.s32.totalorder %s59, %s62
      %p71 = scmp.eq.s32.totalorder %s28, 3
      %p72 = por %p70, %p71
      %p73 = scmp.ne.s32.totalorder %s62, %s63
      %p74 = scmp.eq.s32.totalorder %s28, 0
      %p75 = por %p73, %p74
      %p76 = scmp.ne.s32.totalorder %s62, %s63
      %p77 = scmp.eq.s32.totalorder %s29, 3
      %p78 = por %p76, %p77
      %p80 = scmp.ne.s32.totalorder %s63, %s79
      %p81 = scmp.eq.s32.totalorder %s29, 0
      %p82 = por %p80, %p81
      %s83 = ssub.s32 %s23, %s30
      %p84 = scmp.eq.s32.totalorder %s83, 0
      %s86 = sadd.s32 %s85, 1
      %s87 = scalar_select %p84, %s85, %s86
      %p90 = pneg %p84
      %p91 = scmp.eq.s32.totalorder %s23, 3
      %p92 = por %p90, %p91
      %p93 = scmp.ne.s32.totalorder %s85, %s88
      %p94 = scmp.eq.s32.totalorder %s23, 0
      %p95 = por %p93, %p94
      %p96 = scmp.ne.s32.totalorder %s85, %s88
      %p97 = scmp.eq.s32.totalorder %s28, 3
      %p98 = por %p96, %p97
      %p99 = scmp.ne.s32.totalorder %s88, %s89
      %p100 = scmp.eq.s32.totalorder %s28, 0
      %p101 = por %p99, %p100
      %p102 = scmp.ne.s32.totalorder %s88, %s89
      %p103 = scmp.eq.s32.totalorder %s29, 3
      %p104 = por %p102, %p103
      %p106 = scmp.ne.s32.totalorder %s89, %s105
      %p107 = scmp.eq.s32.totalorder %s29, 0
      %p108 = por %p106, %p107
      %s109 = ssub.s32 %s23, %s30
      %p110 = scmp.eq.s32.totalorder %s109, 0
      %s112 = sadd.s32 %s111, 1
      %s113 = scalar_select %p110, %s111, %s112
      %p116 = pneg %p110
      %p117 = scmp.eq.s32.totalorder %s23, 3
      %p118 = por %p116, %p117
      %p119 = scmp.ne.s32.totalorder %s111, %s114
      %p120 = scmp.eq.s32.totalorder %s23, 0
      %p121 = por %p119, %p120
      %p122 = scmp.ne.s32.totalorder %s111, %s114
      %p123 = scmp.eq.s32.totalorder %s28, 3
      %p124 = por %p122, %p123
      %p125 = scmp.ne.s32.totalorder %s114, %s115
      %p126 = scmp.eq.s32.totalorder %s28, 0
      %p127 = por %p125, %p126
      %p128 = scmp.ne.s32.totalorder %s114, %s115
      %p129 = scmp.eq.s32.totalorder %s29, 3
      %p130 = por %p128, %p129
      %p132 = scmp.ne.s32.totalorder %s115, %s131
      %p133 = scmp.eq.s32.totalorder %s29, 0
      %p134 = por %p132, %p133
      %s135 = ssub.s32 %s23, %s30
      %p136 = scmp.eq.s32.totalorder %s135, 0
      %s138 = sadd.s32 %s137, 1
      %s139 = scalar_select %p136, %s137, %s138
      %p142 = pneg %p136
      %p143 = scmp.eq.s32.totalorder %s23, 3
      %p144 = por %p142, %p143
      %p145 = scmp.ne.s32.totalorder %s137, %s140
      %p146 = scmp.eq.s32.totalorder %s23, 0
      %p147 = por %p145, %p146
      %p148 = scmp.ne.s32.totalorder %s137, %s140
      %p149 = scmp.eq.s32.totalorder %s28, 3
      %p150 = por %p148, %p149
      %p151 = scmp.ne.s32.totalorder %s140, %s141
      %p152 = scmp.eq.s32.totalorder %s28, 0
      %p153 = por %p151, %p152
      %p154 = scmp.ne.s32.totalorder %s140, %s141
      %p155 = scmp.eq.s32.totalorder %s29, 3
      %p156 = por %p154, %p155
      %p158 = scmp.ne.s32.totalorder %s141, %s157
      %p159 = scmp.eq.s32.totalorder %s29, 0
      %p160 = por %p158, %p159
      %p161 = scmp.le.s32.totalorder 1, %s23
      %p162 = scmp.lt.s32.totalorder %s23, 5
      %p163 = pnand %p161, %p162
      %p164 = pneg %p163
      // Predicated region
      $region9: #{tpu_custom_call.1} parent=5 // pred_check
        _
      $region10: #{tpu_custom_call.1} parent=5 // pred_check_branch
        %166 = sbr.rel (%p163) target = $region12
      $region11: #{tpu_custom_call.1} parent=5 // pred_region
        %s167 = ssub.s32 %s23, 1
      $region12: #{tpu_custom_call.1} parent=5 // pred_fallthru
        _
      %p168 = scmp.lt.s32.totalorder %s23, 4
      // Predicated region
      $region13: #{tpu_custom_call.1} parent=5 // pred_check
        %p169 = pneg %p168
      $region14: #{tpu_custom_call.1} parent=5 // pred_check_branch
        %171 = sbr.rel (%p169) target = $region16
      $region15: #{tpu_custom_call.1} parent=5 // pred_region
        // Predicated region
        $region17: #{tpu_custom_call.1} parent=15 // pred_check
          %p172 = pneg %p43
        $region18: #{tpu_custom_call.1} parent=15 // pred_check_branch
          %174 = sbr.rel (%p172) target = $region20
        $region19: #{tpu_custom_call.1} parent=15 // pred_region
          %s175 = sand.u32 %s33, 1
          %s176 = scalar_lea.sflag [#allocation3], %s175
          %s177 = sand.u32 %s33, 1
          %s178 = smul.addr %s177, 32
          %s179 = scalar_lea.vmem [#allocation2], %s178
          %s180 = smul.u32 2, %s23
          %182 = vsyncadd %s176, 0
          %s183 = smul.addr %s180, 2
          %s184 = smul.addr %s183, 8
          %s185 = scalar_lea.hbm %s0, %s184
          %s186 = sshll.u32 %s185, 4
          %s187 = int_to_ptr.hbm [resolvable:$true] %s186
          %s188 = sshll.u32 %s179, 4
          %s189 = int_to_ptr.vmem [resolvable:$true] %s188
          %194 = dma.hbm_to_vmem [thread:$0]  %s187, 512, %s189, %s176, 256, 256, 16
        $region20: #{tpu_custom_call.1} parent=15 // pred_fallthru
          _
        // Predicated region
        $region21: #{tpu_custom_call.1} parent=15 // pred_check
          %p195 = pneg %p69
        $region22: #{tpu_custom_call.1} parent=15 // pred_check_branch
          %197 = sbr.rel (%p195) target = $region24
        $region23: #{tpu_custom_call.1} parent=15 // pred_region
          %s198 = sand.u32 %s23, 1
          %s199 = scalar_lea.sflag [#allocation6], %s198
          %s200 = sand.u32 %s59, 1
          %s201 = smul.addr %s200, 4
          %s202 = scalar_lea.vmem [#allocation5], %s201
          %204 = vsyncadd %s199, 0
          %s205 = smul.addr %s23, 2
          %s206 = smul.addr %s205, 2
          %s207 = scalar_lea.hbm %s1, %s206
          %s209 = sshll.u32 %s207, 4
          %s210 = int_to_ptr.hbm [resolvable:$true] %s209
          %s211 = sshll.u32 %s202, 4
          %s212 = int_to_ptr.vmem [resolvable:$true] %s211
          %214 = dma.hbm_to_vmem [thread:$0]  %s210, 64, %s212, %s199
        $region24: #{tpu_custom_call.1} parent=15 // pred_fallthru
          _
        // Predicated region
        $region25: #{tpu_custom_call.1} parent=15 // pred_check
          %p215 = pneg %p95
        $region26: #{tpu_custom_call.1} parent=15 // pred_check_branch
          %217 = sbr.rel (%p215) target = $region28
        $region27: #{tpu_custom_call.1} parent=15 // pred_region
          #allocation12 [shape = 'u32[6]{0}', space=smem, size = 0x18, scoped, tag = 'DMA stride descriptor']
          %s218 = sand.u32 %s23, 1
          %s219 = scalar_lea.sflag [#allocation6], %s218
          %s220 = sand.u32 %s85, 1
          %s221 = smul.addr %s220, 96
          %s222 = scalar_lea.vmem [#allocation7], %s221
          %s223 = smul.u32 2, %s23
          %225 = vsyncadd %s219, 0
          %s226 = smul.addr %s223, 2
          %s227 = smul.addr %s226, 8
          %s228 = scalar_lea.hbm %s2, %s227
          %s230 = sshll.u32 1, 14
          %s231 = sxor.u32 4294967295, %s230
          %s233 = sld [smem:[#allocation0]]
          %s234 = sadd.s32 2, %s233
          %s236 = sshll.u32 7, 26
          %s237 = sxor.u32 4294967295, %s236
          %s238 = sand.u32 0, %s237
          %s239 = sshll.u32 %s234, 26
          %s240 = sor.u32 %s238, %s239
          %s241 = sshll.u32 %s228, 4
          %s242 = int_to_ptr.hbm [resolvable:$true] %s241
          %s243 = sshll.u32 %s222, 4
          %s244 = int_to_ptr.vmem [resolvable:$true] %s243
          %250 = sst [smem:[#allocation12]] 2048
          %s251 = scalar_lea.smem [#allocation12], 1
          %252 = sst [smem:[%s251]] 512
          %s253 = scalar_lea.smem [#allocation12], 2
          %254 = sst [smem:[%s253]] 2
          %s255 = scalar_lea.smem [#allocation12], 3
          %256 = sst [smem:[%s255]] 256
          %s257 = scalar_lea.smem [#allocation12], 4
          %258 = sst [smem:[%s257]] 256
          %s259 = scalar_lea.smem [#allocation12], 5
          %260 = sst [smem:[%s259]] 16
          %262 = dma.general %s242, 1536, %s244, %s219, [#allocation11], [#allocation12], %s240, 0
        $region28: #{tpu_custom_call.1} parent=15 // pred_fallthru
          _
      $region16: #{tpu_custom_call.1} parent=5 // pred_fallthru
        _
      %p263 = scmp.le.s32.totalorder 1, %s23
      %p264 = scmp.lt.s32.totalorder %s23, 5
      %p265 = pnand %p263, %p264
      %p266 = pneg %p265
      // Predicated region
      $region29: #{tpu_custom_call.1} parent=5 // pred_check
        _
      $region30: #{tpu_custom_call.1} parent=5 // pred_check_branch
        %268 = sbr.rel (%p265) target = $region32
      $region31: #{tpu_custom_call.1} parent=5 // pred_region
        %s269 = ssub.s32 %s23, 1
        %s270 = sand.u32 %s36, 1
        %s271 = scalar_lea.sflag [#allocation3], %s270
        %s272 = sand.u32 %s36, 1
        %s273 = smul.addr %s272, 32
        %s274 = scalar_lea.vmem [#allocation2], %s273
        // Predicated region
        $region33: #{tpu_custom_call.1} parent=31 // pred_check
          %p275 = pneg %p49
        $region34: #{tpu_custom_call.1} parent=31 // pred_check_branch
          %277 = sbr.rel (%p275) target = $region36
        $region35: #{tpu_custom_call.1} parent=31 // pred_region
          %279 = dma.done %s271, 512
        $region36: #{tpu_custom_call.1} parent=31 // pred_fallthru
          _
        %s280 = sand.u32 %s28, 1
        %s281 = scalar_lea.sflag [#allocation6], %s280
        %s282 = sand.u32 %s62, 1
        %s283 = smul.addr %s282, 4
        %s284 = scalar_lea.vmem [#allocation5], %s283
        // Predicated region
        $region37: #{tpu_custom_call.1} parent=31 // pred_check
          %p285 = pneg %p75
        $region38: #{tpu_custom_call.1} parent=31 // pred_check_branch
          %287 = sbr.rel (%p285) target = $region40
        $region39: #{tpu_custom_call.1} parent=31 // pred_region
          %289 = dma.done %s281, 64
        $region40: #{tpu_custom_call.1} parent=31 // pred_fallthru
          _
        %s290 = sand.u32 %s28, 1
        %s291 = scalar_lea.sflag [#allocation6], %s290
        %s292 = sand.u32 %s88, 1
        %s293 = smul.addr %s292, 96
        %s294 = scalar_lea.vmem [#allocation7], %s293
        // Predicated region
        $region41: #{tpu_custom_call.1} parent=31 // pred_check
          %p295 = pneg %p101
        $region42: #{tpu_custom_call.1} parent=31 // pred_check_branch
          %297 = sbr.rel (%p295) target = $region44
        $region43: #{tpu_custom_call.1} parent=31 // pred_region
          %299 = dma.done %s291, 1536
        $region44: #{tpu_custom_call.1} parent=31 // pred_fallthru
          _
        %s300 = sand.u32 %s36, 1
        %s301 = scalar_lea.sflag [#allocation3], %s300
        %s302 = sand.u32 %s36, 1
        %s303 = smul.addr %s302, 32
        %s304 = scalar_lea.vmem [#allocation2], %s303
        %p305 = pneg %p49
        %p306 = pneg %p46
        %s307 = sand.u32 %s28, 1
        %s308 = scalar_lea.sflag [#allocation6], %s307
        %s309 = sand.u32 %s62, 1
        %s310 = smul.addr %s309, 4
        %s311 = scalar_lea.vmem [#allocation5], %s310
        %p312 = pneg %p75
        %p313 = pneg %p72
        %s314 = sand.u32 %s28, 1
        %s315 = scalar_lea.sflag [#allocation6], %s314
        %s316 = sand.u32 %s88, 1
        %s317 = smul.addr %s316, 96
        %s318 = scalar_lea.vmem [#allocation7], %s317
        %p319 = pneg %p101
        %p320 = pneg %p98
        %p321 = pneg %p127
        %p322 = pneg %p124
        %s323 = sand.u32 %s114, 1
        %s324 = scalar_lea.sflag [#allocation4], %s323
        %s325 = sand.u32 %s114, 1
        %s326 = smul.addr %s325, 32
        %s327 = scalar_lea.vmem [#allocation8], %s326
        %p328 = pneg %p153
        %p329 = pneg %p150
        %s330 = sand.u32 %s140, 1
        %s331 = scalar_lea.sflag [#allocation10], %s330
        %s332 = sand.u32 %s140, 1
        %s333 = smul.addr %s332, 32
        %s334 = scalar_lea.vmem [#allocation9], %s333
        %s335 = smul.u32 2, %s28
        %s336 = smul.u32 2, %s28
        %s337 = smul.u32 2, %s28
        %s338 = smul.u32 2, %s28
        %v339 = vld [vmem:[%s274] sm:$0xff]
        %v340 = vld [vmem:[%s274 + $0x8] sm:$0xff]
        %v341 = vld [vmem:[%s274 + $0x10] sm:$0xff]
        %v342 = vld [vmem:[%s274 + $0x18] sm:$0xff]
        %v343 = vld [vmem:[%s284] sm:$0xf]
        %v344 = vlaneseq
        %v345 = vshrl.u32 %v344, 7
        %v346 = vadd.s32 %v345, 8
        %v347 = vlaneseq
        %v348 = vand.u32 %v347, 127
        %v349 = vadd.s32 %v348, 128
        %vm350 = vcmp.eq.s32.totalorder %v345, 0
        %vm351 = vcmp.eq.s32.totalorder %v346, 0
        %v352 = vrot.slane %v339, 7
        %v353 = vrot.slane %v340, 7
        %v354 = vrot.slane %v341, 7
        %v355 = vrot.slane %v342, 7
        %vm356 = vcmp.lt.s32.totalorder %v345, 1
        %v357 = vsel %vm356, %v352, %v354
        %v358 = vsel %vm356, %v353, %v355
        %v359 = vsel %vm356, %v354, %v352
        %v360 = vsel %vm356, %v355, %v353
        %v362 = vperm.slane %v343, 0
        %v363 = vperm.slane %v343, 2
        %v366 = vperm.slane %v362, 0
        %v367 = vperm.slane %v363, 0
        %v368 = vsel %vm350, %v366, %v359
        %v369 = vsel %vm350, %v367, %v360
        %v370 = vsel %vm351, %v366, %v357
        %v371 = vsel %vm351, %v367, %v358
        %vm372 = vcmp.eq.s32.totalorder %v345, 15
        %vm373 = vcmp.eq.s32.totalorder %v346, 15
        %v374 = vrot.slane %v339, 1
        %v375 = vrot.slane %v340, 1
        %v376 = vrot.slane %v341, 1
        %v377 = vrot.slane %v342, 1
        %vm378 = vcmp.lt.s32.totalorder %v345, 7
        %v379 = vsel %vm378, %v374, %v376
        %v380 = vsel %vm378, %v375, %v377
        %v381 = vsel %vm378, %v376, %v374
        %v382 = vsel %vm378, %v377, %v375
        %v383 = vperm.slane %v343, 1
        %v384 = vperm.slane %v343, 3
        %v387 = vperm.slane %v383, 1
        %v388 = vperm.slane %v384, 1
        %v389 = vsel %vm372, %v387, %v379
        %v390 = vsel %vm372, %v388, %v380
        %v391 = vsel %vm373, %v387, %v381
        %v392 = vsel %vm373, %v388, %v382
        %v393 = vadd.f32 %v368, %v389
        %v394 = vadd.f32 %v369, %v390
        %v395 = vadd.f32 %v370, %v391
        %v396 = vadd.f32 %v371, %v392
        %v397 = vmul.f32 %v393, 3.0
        %v398 = vmul.f32 %v394, 3.0
        %v399 = vmul.f32 %v395, 3.0
        %v400 = vmul.f32 %v396, 3.0
        %v401 = vmul.f32 %v339, 10.0
        %v402 = vmul.f32 %v340, 10.0
        %v403 = vmul.f32 %v341, 10.0
        %v404 = vmul.f32 %v342, 10.0
        %v405 = vadd.f32 %v397, %v401
        %v406 = vadd.f32 %v398, %v402
        %v407 = vadd.f32 %v399, %v403
        %v408 = vadd.f32 %v400, %v404
        %v409 = vsub.f32 %v389, %v368
        %v410 = vsub.f32 %v390, %v369
        %v411 = vsub.f32 %v391, %v370
        %v412 = vsub.f32 %v392, %v371
        %vm413 = vcmp.eq.s32.totalorder %v348, 0
        %vm414 = vcmp.eq.s32.totalorder %v349, 0
        %vm415 = vcmp.eq.s32.totalorder %v348, 255
        %vm416 = vcmp.eq.s32.totalorder %v349, 255
        %417 = vrot.lane.b32.xlu0 %v405, 127
        %v418 = vpop.permute.xlu0 %417
        %419 = vrot.lane.b32.xlu0 %v407, 127
        %v420 = vpop.permute.xlu0 %419
        %421 = vrot.lane.b32.xlu0 %v406, 127
        %v422 = vpop.permute.xlu0 %421
        %423 = vrot.lane.b32.xlu0 %v408, 127
        %v424 = vpop.permute.xlu0 %423
        %vm425 = vcmp.lt.s32.totalorder %v348, 127
        %v426 = vsel %vm425, %v418, %v422
        %v427 = vsel %vm425, %v420, %v424
        %v428 = vsel %vm425, %v422, %v418
        %v429 = vsel %vm425, %v424, %v420
        %v430 = vsel %vm415, 0.0, %v426
        %v431 = vsel %vm416, 0.0, %v428
        %v432 = vsel %vm415, 0.0, %v427
        %v433 = vsel %vm416, 0.0, %v429
        %434 = vrot.lane.b32.xlu0 %v405, 1
        %v435 = vpop.permute.xlu0 %434
        %436 = vrot.lane.b32.xlu0 %v407, 1
        %v437 = vpop.permute.xlu0 %436
        %438 = vrot.lane.b32.xlu0 %v406, 1
        %v439 = vpop.permute.xlu0 %438
        %440 = vrot.lane.b32.xlu0 %v408, 1
        %v441 = vpop.permute.xlu0 %440
        %vm442 = vcmp.lt.s32.totalorder %v348, 1
        %v443 = vsel %vm442, %v435, %v439
        %v444 = vsel %vm442, %v437, %v441
        %v445 = vsel %vm442, %v439, %v435
        %v446 = vsel %vm442, %v441, %v437
        %v447 = vsel %vm413, 0.0, %v445
        %v448 = vsel %vm414, 0.0, %v443
        %v449 = vsel %vm413, 0.0, %v446
        %v450 = vsel %vm414, 0.0, %v444
        %v451 = vsub.f32 %v430, %v447
        %v452 = vsub.f32 %v431, %v448
        %v453 = vsub.f32 %v432, %v449
        %v454 = vsub.f32 %v433, %v450
        %v455 = vmul.f32 %v451, 0.03125
        %v456 = vmul.f32 %v452, 0.03125
        %v457 = vmul.f32 %v453, 0.03125
        %v458 = vmul.f32 %v454, 0.03125
        %459 = vrot.lane.b32.xlu0 %v409, 1
        %v460 = vpop.permute.xlu0 %459
        %461 = vrot.lane.b32.xlu0 %v411, 1
        %v462 = vpop.permute.xlu0 %461
        %463 = vrot.lane.b32.xlu0 %v410, 1
        %v464 = vpop.permute.xlu0 %463
        %465 = vrot.lane.b32.xlu0 %v412, 1
        %v466 = vpop.permute.xlu0 %465
        %v467 = vsel %vm442, %v460, %v464
        %v468 = vsel %vm442, %v462, %v466
        %v469 = vsel %vm442, %v464, %v460
        %v470 = vsel %vm442, %v466, %v462
        %v471 = vsel %vm413, 0.0, %v469
        %v472 = vsel %vm414, 0.0, %v467
        %v473 = vsel %vm413, 0.0, %v470
        %v474 = vsel %vm414, 0.0, %v468
        %475 = vrot.lane.b32.xlu0 %v409, 127
        %v476 = vpop.permute.xlu0 %475
        %477 = vrot.lane.b32.xlu0 %v411, 127
        %v478 = vpop.permute.xlu0 %477
        %479 = vrot.lane.b32.xlu0 %v410, 127
        %v480 = vpop.permute.xlu0 %479
        %481 = vrot.lane.b32.xlu0 %v412, 127
        %v482 = vpop.permute.xlu0 %481
        %v483 = vsel %vm425, %v476, %v480
        %v484 = vsel %vm425, %v478, %v482
        %v485 = vsel %vm425, %v480, %v476
        %v486 = vsel %vm425, %v482, %v478
        %v487 = vsel %vm415, 0.0, %v483
        %v488 = vsel %vm416, 0.0, %v485
        %v489 = vsel %vm415, 0.0, %v484
        %v490 = vsel %vm416, 0.0, %v486
        %v491 = vadd.f32 %v471, %v487
        %v492 = vadd.f32 %v472, %v488
        %v493 = vadd.f32 %v473, %v489
        %v494 = vadd.f32 %v474, %v490
        %v495 = vmul.f32 %v491, 3.0
        %v496 = vmul.f32 %v492, 3.0
        %v497 = vmul.f32 %v493, 3.0
        %v498 = vmul.f32 %v494, 3.0
        %v499 = vmul.f32 %v409, 10.0
        %v500 = vmul.f32 %v410, 10.0
        %v501 = vmul.f32 %v411, 10.0
        %v502 = vmul.f32 %v412, 10.0
        %v503 = vadd.f32 %v495, %v499
        %v504 = vadd.f32 %v496, %v500
        %v505 = vadd.f32 %v497, %v501
        %v506 = vadd.f32 %v498, %v502
        %v507 = vmul.f32 %v503, 0.03125
        %v508 = vmul.f32 %v504, 0.03125
        %v509 = vmul.f32 %v505, 0.03125
        %v510 = vmul.f32 %v506, 0.03125
        %v511 = vrcp.pop %v339
        %v512 = vmul.f32 %v339, %v511
        %v513 = vsub.f32 1.0, %v512
        %v514 = vmul.f32 %v511, %v513
        %v515 = vadd.f32 %v511, %v514
        %vm516 = vweird.f32 %v339
        %vm517 = vweird.f32 %v511
        %vm518 = vmor %vm516, %vm517
        %v519 = vsel %vm518, %v511, %v515
        %v520 = vand.u32 2147483647, %v339
        %vm521 = vcmp.eq.f32.partialorder %v520, 8.507059e+37
        %v522 = vand.u32 %v339, 2147483648
        %v523 = vor.u32 1.1754944e-38, %v522
        %v524 = vsel %vm521, %v523, %v519
        %v525 = vrcp.pop %v340
        %v526 = vmul.f32 %v340, %v525
        %v527 = vsub.f32 1.0, %v526
        %v528 = vmul.f32 %v525, %v527
        %v529 = vadd.f32 %v525, %v528
        %vm530 = vweird.f32 %v340
        %vm531 = vweird.f32 %v525
        %vm532 = vmor %vm530, %vm531
        %v533 = vsel %vm532, %v525, %v529
        %v534 = vand.u32 2147483647, %v340
        %vm535 = vcmp.eq.f32.partialorder %v534, 8.507059e+37
        %v536 = vand.u32 %v340, 2147483648
        %v537 = vor.u32 1.1754944e-38, %v536
        %v538 = vsel %vm535, %v537, %v533
        %v539 = vrcp.pop %v341
        %v540 = vmul.f32 %v341, %v539
        %v541 = vsub.f32 1.0, %v540
        %v542 = vmul.f32 %v539, %v541
        %v543 = vadd.f32 %v539, %v542
        %vm544 = vweird.f32 %v341
        %vm545 = vweird.f32 %v539
        %vm546 = vmor %vm544, %vm545
        %v547 = vsel %vm546, %v539, %v543
        %v548 = vand.u32 2147483647, %v341
        %vm549 = vcmp.eq.f32.partialorder %v548, 8.507059e+37
        %v550 = vand.u32 %v341, 2147483648
        %v551 = vor.u32 1.1754944e-38, %v550
        %v552 = vsel %vm549, %v551, %v547
        %v553 = vrcp.pop %v342
        %v554 = vmul.f32 %v342, %v553
        %v555 = vsub.f32 1.0, %v554
        %v556 = vmul.f32 %v553, %v555
        %v557 = vadd.f32 %v553, %v556
        %vm558 = vweird.f32 %v342
        %vm559 = vweird.f32 %v553
        %vm560 = vmor %vm558, %vm559
        %v561 = vsel %vm560, %v553, %v557
        %v562 = vand.u32 2147483647, %v342
        %vm563 = vcmp.eq.f32.partialorder %v562, 8.507059e+37
        %v564 = vand.u32 %v342, 2147483648
        %v565 = vor.u32 1.1754944e-38, %v564
        %v566 = vsel %vm563, %v565, %v561
        %v567 = vmul.f32 %v455, %v524
        %v568 = vmul.f32 %v456, %v538
        %v569 = vmul.f32 %v457, %v552
        %v570 = vmul.f32 %v458, %v566
        %v571 = vmul.f32 %v507, %v524
        %v572 = vmul.f32 %v508, %v538
        %v573 = vmul.f32 %v509, %v552
        %v574 = vmul.f32 %v510, %v566
        %s575 = smul.u32 %s28, 16
        %s576 = scvt.s32.f32 %s575
        %v577 = vcvt.s32.f32 %v348
        %v578 = vcvt.s32.f32 %v349
        %v579 = vcvt.s32.f32 %v345
        %v580 = vcvt.s32.f32 %v346
        %v581 = vstv %s576
        %v582 = vadd.f32 %v579, %v581
        %v583 = vadd.f32 %v580, %v581
        %v584 = vsub.f32 %v577, 127.5
        %v585 = vsub.f32 %v578, 127.5
        %v586 = vsub.f32 %v582, 31.5
        %v587 = vsub.f32 %v583, 31.5
        %v588 = vmul.f32 %v567, 182.85715
        %v589 = vmul.f32 %v568, 182.85715
        %v590 = vmul.f32 %v569, 182.85715
        %v591 = vmul.f32 %v570, 182.85715
        %v592 = vmul.f32 %v571, 53.333332
        %v593 = vmul.f32 %v572, 53.333332
        %v594 = vmul.f32 %v573, 53.333332
        %v595 = vmul.f32 %v574, 53.333332
        %v596 = vmul.f32 %v584, %v567
        %v597 = vmul.f32 %v585, %v568
        %v598 = vmul.f32 %v584, %v569
        %v599 = vmul.f32 %v585, %v570
        %v600 = vadd.f32 %v596, 1.0
        %v601 = vadd.f32 %v597, 1.0
        %v602 = vadd.f32 %v598, 1.0
        %v603 = vadd.f32 %v599, 1.0
        %v604 = vmul.f32 %v586, %v571
        %v605 = vmul.f32 %v586, %v572
        %v606 = vmul.f32 %v587, %v573
        %v607 = vmul.f32 %v587, %v574
        %v608 = vadd.f32 %v600, %v604
        %v609 = vadd.f32 %v601, %v605
        %v610 = vadd.f32 %v602, %v606
        %v611 = vadd.f32 %v603, %v607
        %v612 = vsub.f32 0.0, %v608
        %v613 = vsub.f32 0.0, %v609
        %v614 = vsub.f32 0.0, %v610
        %v615 = vsub.f32 0.0, %v611
        %v616 = vmul.f32 %v588, %v588
        %v617 = vmul.f32 %v589, %v589
        %v618 = vmul.f32 %v590, %v590
        %v619 = vmul.f32 %v591, %v591
        %v620 = vmul.f32 %v592, %v592
        %v621 = vmul.f32 %v593, %v593
        %v622 = vmul.f32 %v594, %v594
        %v623 = vmul.f32 %v595, %v595
        %v624 = vadd.f32 %v616, %v620
        %v625 = vadd.f32 %v617, %v621
        %v626 = vadd.f32 %v618, %v622
        %v627 = vadd.f32 %v619, %v623
        %v628 = vmul.f32 %v612, %v612
        %v629 = vmul.f32 %v613, %v613
        %v630 = vmul.f32 %v614, %v614
        %v631 = vmul.f32 %v615, %v615
        %v632 = vadd.f32 %v624, %v628
        %v633 = vadd.f32 %v625, %v629
        %v634 = vadd.f32 %v626, %v630
        %v635 = vadd.f32 %v627, %v631
        %v636 = vrsqrt.pop %v632
        %v637 = vmul.f32 %v636, %v632
        %v638 = vmul.f32 %v637, %v636
        %v639 = vmul.f32 0.5, %v638
        %v640 = vsub.f32 1.5, %v639
        %v641 = vmul.f32 %v636, %v640
        %vm642 = vweird.f32 %v632
        %vm643 = vweird.f32 %v636
        %vm644 = vmor %vm642, %vm643
        %v645 = vsel %vm644, %v636, %v641
        %v646 = vrsqrt.pop %v633
        %v647 = vmul.f32 %v646, %v633
        %v648 = vmul.f32 %v647, %v646
        %v649 = vmul.f32 0.5, %v648
        %v650 = vsub.f32 1.5, %v649
        %v651 = vmul.f32 %v646, %v650
        %vm652 = vweird.f32 %v633
        %vm653 = vweird.f32 %v646
        %vm654 = vmor %vm652, %vm653
        %v655 = vsel %vm654, %v646, %v651
        %v656 = vrsqrt.pop %v634
        %v657 = vmul.f32 %v656, %v634
        %v658 = vmul.f32 %v657, %v656
        %v659 = vmul.f32 0.5, %v658
        %v660 = vsub.f32 1.5, %v659
        %v661 = vmul.f32 %v656, %v660
        %vm662 = vweird.f32 %v634
        %vm663 = vweird.f32 %v656
        %vm664 = vmor %vm662, %vm663
        %v665 = vsel %vm664, %v656, %v661
        %v666 = vrsqrt.pop %v635
        %v667 = vmul.f32 %v666, %v635
        %v668 = vmul.f32 %v667, %v666
        %v669 = vmul.f32 0.5, %v668
        %v670 = vsub.f32 1.5, %v669
        %v671 = vmul.f32 %v666, %v670
        %vm672 = vweird.f32 %v635
        %vm673 = vweird.f32 %v666
        %vm674 = vmor %vm672, %vm673
        %v675 = vsel %vm674, %v666, %v671
        %v676 = vld [vmem:[%s294] sm:$0xff]
        %v677 = vld [vmem:[%s294 + $0x8] sm:$0xff]
        %v678 = vld [vmem:[%s294 + $0x10] sm:$0xff]
        %v679 = vld [vmem:[%s294 + $0x18] sm:$0xff]
        %s680 = scalar_lea.vmem %s294, 32 [#allocation7]
        %v681 = vld [vmem:[%s680] sm:$0xff]
        %v682 = vld [vmem:[%s680 + $0x8] sm:$0xff]
        %v683 = vld [vmem:[%s680 + $0x10] sm:$0xff]
        %v684 = vld [vmem:[%s680 + $0x18] sm:$0xff]
        %s685 = scalar_lea.vmem %s294, 64 [#allocation7]
        %v686 = vld [vmem:[%s685] sm:$0xff]
        %v687 = vld [vmem:[%s685 + $0x8] sm:$0xff]
        %v688 = vld [vmem:[%s685 + $0x10] sm:$0xff]
        %v689 = vld [vmem:[%s685 + $0x18] sm:$0xff]
        %v690 = vmul.f32 %v676, %v676
        %v691 = vmul.f32 %v677, %v677
        %v692 = vmul.f32 %v678, %v678
        %v693 = vmul.f32 %v679, %v679
        %v694 = vmul.f32 %v681, %v681
        %v695 = vmul.f32 %v682, %v682
        %v696 = vmul.f32 %v683, %v683
        %v697 = vmul.f32 %v684, %v684
        %v698 = vadd.f32 %v690, %v694
        %v699 = vadd.f32 %v691, %v695
        %v700 = vadd.f32 %v692, %v696
        %v701 = vadd.f32 %v693, %v697
        %v702 = vmul.f32 %v686, %v686
        %v703 = vmul.f32 %v687, %v687
        %v704 = vmul.f32 %v688, %v688
        %v705 = vmul.f32 %v689, %v689
        %v706 = vadd.f32 %v698, %v702
        %v707 = vadd.f32 %v699, %v703
        %v708 = vadd.f32 %v700, %v704
        %v709 = vadd.f32 %v701, %v705
        %v710 = vmax.f32 %v706, 1e-16
        %v711 = vmax.f32 %v707, 1e-16
        %v712 = vmax.f32 %v708, 1e-16
        %v713 = vmax.f32 %v709, 1e-16
        %v714 = vrsqrt.pop %v710
        %v715 = vmul.f32 %v714, %v710
        %v716 = vmul.f32 %v715, %v714
        %v717 = vmul.f32 0.5, %v716
        %v718 = vsub.f32 1.5, %v717
        %v719 = vmul.f32 %v714, %v718
        %vm720 = vweird.f32 %v710
        %vm721 = vweird.f32 %v714
        %vm722 = vmor %vm720, %vm721
        %v723 = vsel %vm722, %v714, %v719
        %v724 = vrsqrt.pop %v711
        %v725 = vmul.f32 %v724, %v711
        %v726 = vmul.f32 %v725, %v724
        %v727 = vmul.f32 0.5, %v726
        %v728 = vsub.f32 1.5, %v727
        %v729 = vmul.f32 %v724, %v728
        %vm730 = vweird.f32 %v711
        %vm731 = vweird.f32 %v724
        %vm732 = vmor %vm730, %vm731
        %v733 = vsel %vm732, %v724, %v729
        %v734 = vrsqrt.pop %v712
        %v735 = vmul.f32 %v734, %v712
        %v736 = vmul.f32 %v735, %v734
        %v737 = vmul.f32 0.5, %v736
        %v738 = vsub.f32 1.5, %v737
        %v739 = vmul.f32 %v734, %v738
        %vm740 = vweird.f32 %v712
        %vm741 = vweird.f32 %v734
        %vm742 = vmor %vm740, %vm741
        %v743 = vsel %vm742, %v734, %v739
        %v744 = vrsqrt.pop %v713
        %v745 = vmul.f32 %v744, %v713
        %v746 = vmul.f32 %v745, %v744
        %v747 = vmul.f32 0.5, %v746
        %v748 = vsub.f32 1.5, %v747
        %v749 = vmul.f32 %v744, %v748
        %vm750 = vweird.f32 %v713
        %vm751 = vweird.f32 %v744
        %vm752 = vmor %vm750, %vm751
        %v753 = vsel %vm752, %v744, %v749
        %v754 = vmul.f32 %v676, %v588
        %v755 = vmul.f32 %v677, %v589
        %v756 = vmul.f32 %v678, %v590
        %v757 = vmul.f32 %v679, %v591
        %v758 = vmul.f32 %v681, %v592
        %v759 = vmul.f32 %v682, %v593
        %v760 = vmul.f32 %v683, %v594
        %v761 = vmul.f32 %v684, %v595
        %v762 = vadd.f32 %v754, %v758
        %v763 = vadd.f32 %v755, %v759
        %v764 = vadd.f32 %v756, %v760
        %v765 = vadd.f32 %v757, %v761
        %v766 = vmul.f32 %v686, %v612
        %v767 = vmul.f32 %v687, %v613
        %v768 = vmul.f32 %v688, %v614
        %v769 = vmul.f32 %v689, %v615
        %v770 = vadd.f32 %v762, %v766
        %v771 = vadd.f32 %v763, %v767
        %v772 = vadd.f32 %v764, %v768
        %v773 = vadd.f32 %v765, %v769
        %v774 = vmul.f32 %v645, %v723
        %v775 = vmul.f32 %v655, %v733
        %v776 = vmul.f32 %v665, %v743
        %v777 = vmul.f32 %v675, %v753
        %v778 = vmul.f32 %v770, %v774
        %v779 = vmul.f32 %v771, %v775
        %v780 = vmul.f32 %v772, %v776
        %v781 = vmul.f32 %v773, %v777
        %782 = vst [vmem:[%s327] sm:$0xff] %v778
        %783 = vst [vmem:[%s327 + $0x8] sm:$0xff] %v779
        %784 = vst [vmem:[%s327 + $0x10] sm:$0xff] %v780
        %785 = vst [vmem:[%s327 + $0x18] sm:$0xff] %v781
        %v786 = vmul.f32 %v455, %v455
        %v787 = vmul.f32 %v456, %v456
        %v788 = vmul.f32 %v457, %v457
        %v789 = vmul.f32 %v458, %v458
        %v790 = vmul.f32 %v507, %v507
        %v791 = vmul.f32 %v508, %v508
        %v792 = vmul.f32 %v509, %v509
        %v793 = vmul.f32 %v510, %v510
        %v794 = vadd.f32 %v786, %v790
        %v795 = vadd.f32 %v787, %v791
        %v796 = vadd.f32 %v788, %v792
        %v797 = vadd.f32 %v789, %v793
        %v798 = vrsqrt.pop %v794
        %v799 = vmul.f32 %v798, %v794
        %v800 = vmul.f32 %v799, %v798
        %v801 = vmul.f32 0.5, %v800
        %v802 = vsub.f32 1.5, %v801
        %v803 = vmul.f32 %v798, %v802
        %v804 = vmul.f32 %v794, %v803
        %vm805 = vcmp.eq.f32.partialorder %v794, inf
        %v806 = vsel %vm805, %v794, %v804
        %vm807 = vcmp.eq.f32.partialorder %v794, 0.0
        %v808 = vand.u32 %v794, 2147483648
        %v809 = vsel %vm807, %v808, %v806
        %v810 = vrsqrt.pop %v795
        %v811 = vmul.f32 %v810, %v795
        %v812 = vmul.f32 %v811, %v810
        %v813 = vmul.f32 0.5, %v812
        %v814 = vsub.f32 1.5, %v813
        %v815 = vmul.f32 %v810, %v814
        %v816 = vmul.f32 %v795, %v815
        %vm817 = vcmp.eq.f32.partialorder %v795, inf
        %v818 = vsel %vm817, %v795, %v816
        %vm819 = vcmp.eq.f32.partialorder %v795, 0.0
        %v820 = vand.u32 %v795, 2147483648
        %v821 = vsel %vm819, %v820, %v818
        %v822 = vrsqrt.pop %v796
        %v823 = vmul.f32 %v822, %v796
        %v824 = vmul.f32 %v823, %v822
        %v825 = vmul.f32 0.5, %v824
        %v826 = vsub.f32 1.5, %v825
        %v827 = vmul.f32 %v822, %v826
        %v828 = vmul.f32 %v796, %v827
        %vm829 = vcmp.eq.f32.partialorder %v796, inf
        %v830 = vsel %vm829, %v796, %v828
        %vm831 = vcmp.eq.f32.partialorder %v796, 0.0
        %v832 = vand.u32 %v796, 2147483648
        %v833 = vsel %vm831, %v832, %v830
        %v834 = vrsqrt.pop %v797
        %v835 = vmul.f32 %v834, %v797
        %v836 = vmul.f32 %v835, %v834
        %v837 = vmul.f32 0.5, %v836
        %v838 = vsub.f32 1.5, %v837
        %v839 = vmul.f32 %v834, %v838
        %v840 = vmul.f32 %v797, %v839
        %vm841 = vcmp.eq.f32.partialorder %v797, inf
        %v842 = vsel %vm841, %v797, %v840
        %vm843 = vcmp.eq.f32.partialorder %v797, 0.0
        %v844 = vand.u32 %v797, 2147483648
        %v845 = vsel %vm843, %v844, %v842
        %846 = vst [vmem:[%s334] sm:$0xff] %v809
        %847 = vst [vmem:[%s334 + $0x8] sm:$0xff] %v821
        %848 = vst [vmem:[%s334 + $0x10] sm:$0xff] %v833
        %849 = vst [vmem:[%s334 + $0x18] sm:$0xff] %v845
        %s850 = sand.u32 %s114, 1
        %s851 = scalar_lea.sflag [#allocation4], %s850
        %s852 = sand.u32 %s114, 1
        %s853 = smul.addr %s852, 32
        %s854 = scalar_lea.vmem [#allocation8], %s853
        %s855 = sand.u32 %s140, 1
        %s856 = scalar_lea.sflag [#allocation10], %s855
        %s857 = sand.u32 %s140, 1
        %s858 = smul.addr %s857, 32
        %s859 = scalar_lea.vmem [#allocation9], %s858
        // Predicated region
        $region45: #{tpu_custom_call.1} parent=31 // pred_check
          %p860 = pneg %p124
        $region46: #{tpu_custom_call.1} parent=31 // pred_check_branch
          %862 = sbr.rel (%p860) target = $region48
        $region47: #{tpu_custom_call.1} parent=31 // pred_region
          %s863 = smul.u32 2, %s28
          %865 = vsyncadd %s851, 0
          %s866 = smul.addr %s863, 2
          %s867 = smul.addr %s866, 8
          %s868 = scalar_lea.hbm %s3, %s867
          %s869 = sshll.u32 %s854, 4
          %s870 = int_to_ptr.vmem [resolvable:$true] %s869
          %s871 = sshll.u32 %s868, 4
          %s872 = int_to_ptr.hbm [resolvable:$true] %s871
          %877 = dma.vmem_to_hbm [thread:$0]  %s870, 512, %s872, %s851, 256, 256, 16
        $region48: #{tpu_custom_call.1} parent=31 // pred_fallthru
          _
        // Predicated region
        $region49: #{tpu_custom_call.1} parent=31 // pred_check
          %p878 = pneg %p150
        $region50: #{tpu_custom_call.1} parent=31 // pred_check_branch
          %880 = sbr.rel (%p878) target = $region52
        $region51: #{tpu_custom_call.1} parent=31 // pred_region
          %s881 = smul.u32 2, %s28
          %883 = vsyncadd %s856, 0
          %s884 = smul.addr %s881, 2
          %s885 = smul.addr %s884, 8
          %s886 = scalar_lea.hbm %s4, %s885
          %s887 = sshll.u32 %s859, 4
          %s888 = int_to_ptr.vmem [resolvable:$true] %s887
          %s889 = sshll.u32 %s886, 4
          %s890 = int_to_ptr.hbm [resolvable:$true] %s889
          %895 = dma.vmem_to_hbm [thread:$0]  %s888, 512, %s890, %s856, 256, 256, 16
        $region52: #{tpu_custom_call.1} parent=31 // pred_fallthru
          _
      $region32: #{tpu_custom_call.1} parent=5 // pred_fallthru
        _
      %p896 = scmp.le.s32.totalorder 2, %s23
      // Predicated region
      $region53: #{tpu_custom_call.1} parent=5 // pred_check
        %p897 = pneg %p896
      $region54: #{tpu_custom_call.1} parent=5 // pred_check_branch
        %899 = sbr.rel (%p897) target = $region56
      $region55: #{tpu_custom_call.1} parent=5 // pred_region
        %s900 = ssub.s32 %s23, 2
        // Predicated region
        $region57: #{tpu_custom_call.1} parent=55 // pred_check
          %p901 = pneg %p130
        $region58: #{tpu_custom_call.1} parent=55 // pred_check_branch
          %903 = sbr.rel (%p901) target = $region60
        $region59: #{tpu_custom_call.1} parent=55 // pred_region
          %s904 = sand.u32 %s115, 1
          %s905 = scalar_lea.sflag [#allocation4], %s904
          %s906 = sand.u32 %s115, 1
          %s907 = smul.addr %s906, 32
          %s908 = scalar_lea.vmem [#allocation8], %s907
          %910 = dma.done %s905, 512
        $region60: #{tpu_custom_call.1} parent=55 // pred_fallthru
          _
        // Predicated region
        $region61: #{tpu_custom_call.1} parent=55 // pred_check
          %p911 = pneg %p156
        $region62: #{tpu_custom_call.1} parent=55 // pred_check_branch
          %913 = sbr.rel (%p911) target = $region64
        $region63: #{tpu_custom_call.1} parent=55 // pred_region
          %s914 = sand.u32 %s141, 1
          %s915 = scalar_lea.sflag [#allocation10], %s914
          %s916 = sand.u32 %s141, 1
          %s917 = smul.addr %s916, 32
          %s918 = scalar_lea.vmem [#allocation9], %s917
          %920 = dma.done %s915, 512
        $region64: #{tpu_custom_call.1} parent=55 // pred_fallthru
          _
      $region56: #{tpu_custom_call.1} parent=5 // pred_fallthru
        _
    $region6: #{tpu_custom_call.1} parent=1 // loop_footer
      %s27 = sadd.s32 1, %s23
    $region7: #{tpu_custom_call.1} parent=1 // loop_footer_branch
      %22 = sbr.rel target = $region3
    $region8: #{tpu_custom_call.1} parent=1 // loop_exit
      _
    %921 = vsyncpa [#allocation3], 1
    %s922 = scalar_lea.sflag [#allocation3], 1
    %923 = vsyncpa %s922, 1
    %924 = vsyncpa [#allocation6], 1
    %s925 = scalar_lea.sflag [#allocation6], 1
    %926 = vsyncpa %s925, 1
    %927 = vsyncpa [#allocation4], 1
    %s928 = scalar_lea.sflag [#allocation4], 1
    %929 = vsyncpa %s928, 1
    %930 = vsyncpa [#allocation10], 1
    %s931 = scalar_lea.sflag [#allocation10], 1
    %932 = vsyncpa %s931, 1

</llo_original>
